<compile_context>
chip_gen: v7x
topology: tpu7x:2x2x1
jax: 0.10.0
libtpu: 0.0.40
codegen_flags: <defaults>
</compile_context>

<pallas_src>
import functools

import jax
import jax.numpy as jnp
from jax import lax
from jax.experimental import pallas as pl
from jax.experimental.pallas import tpu as pltpu


def _reduce_sum_kernel(x_ref, o_ref, acc_ref, *, k, w, hr, th):
    """x_ref: (TM, TH, k*w) tile; o_ref: (TM, w); acc_ref: (TM, w) scratch."""
    j = pl.program_id(1)

    @pl.when(j == 0)
    def _init():
        acc_ref[...] = jnp.zeros_like(acc_ref)

    x = x_ref[...]
    if hr % th != 0:
        # Ragged last H block: zero the padded (stale-VMEM) rows before reducing.
        valid = hr - j * th
        row = lax.broadcasted_iota(jnp.int32, x.shape, 1)
        x = jnp.where(row < valid, x, jnp.zeros_like(x))

    # Reduce the (folded) H axis with a wide accumulator.
    s = jnp.sum(x, axis=1, dtype=acc_ref.dtype)          # (TM, k*w)

    # Fold the k lane groups back to width w (static unrolled chain; k is small).
    part = s[:, 0:w]
    for f in range(1, k):
        part = part + s[:, f * w:(f + 1) * w]
    acc_ref[...] += part

    @pl.when(j == pl.num_programs(1) - 1)
    def _store():
        o_ref[...] = acc_ref[...].astype(o_ref.dtype)


def _lane_fold(h: int, w: int) -> int:
    """Divisor k of h so that k*w is lane-dense (>=128, ideally % 128 == 0)."""
    if w >= 128:
        return 1
    fallback = None
    for cand in range(1, h + 1):
        if h % cand:
            continue
        if (cand * w) % 128 == 0:
            return cand
        if fallback is None and cand * w >= 128:
            fallback = cand
    return fallback if fallback is not None else h


def _plan_tiling(m: int, hr: int, wl: int, itemsize: int):
    """Pick (tm, th, input_tile_bytes) for the (m, hr, wl) reshaped input."""
    pack = max(1, 4 // itemsize)          # sublane packing: 1 f32, 2 bf16, 4 int8
    sub = 8 * pack
    padded_wl = pl.cdiv(wl, 128) * 128

    def tile_bytes(tm, th):
        return tm * (pl.cdiv(th, sub) * sub) * padded_wl * itemsize

    target = 4 * 1024 * 1024              # per input buffer (x2 double-buffered)

    # --- rows per block along flattened (N*C), preferring full-H tiles ---
    if m <= 8:
        tm = m                            # full extent is always a legal block dim
    else:
        fit = target // tile_bytes(1, hr)
        if fit >= m:
            tm = m
        elif fit >= 8:
            tm = int((fit // 8) * 8)
        else:
            tm = 8                        # minimum legal multiple-of-8 block
    # --- split the H (reduction) axis only if a full-H tile blows the budget ---
    if tile_bytes(tm, hr) <= target or hr <= sub:
        th = hr
    else:
        group = tile_bytes(tm, sub)       # bytes for `sub` rows of H
        ngroups = max(1, target // group)
        th = min(hr, int(ngroups * sub))
        if th >= hr:
            th = hr
    # --- megacore: ensure >=2 parallel steps for dual-TC chips when M allows ---
    if pl.cdiv(m, tm) == 1 and m >= 16:
        tm = int(pl.cdiv(pl.cdiv(m, 2), 8) * 8)

    return tm, th, tile_bytes(tm, th)


def reduce_sum(x: jax.Array) -> jax.Array:
    """Equivalent of the PyTorch ReduceSum.forward for a 4D NCHW tensor."""
    n, c, h, w = x.shape
    m = n * c
    itemsize = jnp.dtype(x.dtype).itemsize

    # Lane-dense repack: (m, h, w) -> (m, h//k, k*w) is a free row-major reshape.
    k = _lane_fold(h, w)
    hr, wl = h // k, k * w
    xf = x.reshape(m, hr, wl)

    tm, th, in_tile_bytes = _plan_tiling(m, hr, wl, itemsize)
    grid = (pl.cdiv(m, tm), pl.cdiv(hr, th))

    # Integer inputs accumulate in int32 (PyTorch-style exactness); floats in f32.
    acc_dtype = jnp.int32 if jnp.issubdtype(x.dtype, jnp.integer) else jnp.float32

    kernel = functools.partial(_reduce_sum_kernel, k=k, w=w, hr=hr, th=th)

    # VMEM budget estimate; only pass an explicit limit for extreme shapes where
    # the minimum legal tile exceeds the default scoped limits.
    out_tile = pl.cdiv(tm, 8) * 8 * pl.cdiv(w, 128) * 128 * itemsize
    acc_tile = pl.cdiv(tm, 8) * 8 * pl.cdiv(w, 128) * 128 * 4
    est_vmem = 2 * in_tile_bytes + 2 * out_tile + acc_tile
    cp_kwargs = dict(dimension_semantics=("parallel", "arbitrary"))
    if est_vmem > 30 * 1024 * 1024:
        cp_kwargs["vmem_limit_bytes"] = int(min(est_vmem * 5 // 4, 96 * 1024 * 1024))

    out2d = pl.pallas_call(
        kernel,
        out_shape=jax.ShapeDtypeStruct((m, w), x.dtype),
        grid_spec=pltpu.PrefetchScalarGridSpec(
            num_scalar_prefetch=0,
            grid=grid,
            in_specs=[pl.BlockSpec((tm, th, wl), lambda i, j: (i, j, 0))],
            out_specs=pl.BlockSpec((tm, w), lambda i, j: (i, 0)),
            scratch_shapes=[pltpu.VMEM((tm, w), acc_dtype)],
        ),
        compiler_params=pltpu.CompilerParams(**cp_kwargs),
        cost_estimate=pl.CostEstimate(
            flops=m * h * w,
            transcendentals=0,
            bytes_accessed=m * h * w * itemsize + m * w * itemsize,
        ),
    )(xf)

    return out2d.reshape(n, c, 1, w)


def reduce_sum_reference(x: jax.Array) -> jax.Array:
    # Pure-JAX reference mirroring the PyTorch ops exactly.
    tr1 = jnp.swapaxes(x, 0, 2)
    s1 = jnp.sum(tr1, axis=0, keepdims=True)
    return jnp.swapaxes(s1, 0, 2)


if __name__ == "__main__":
    key = jax.random.PRNGKey(0)
    x = jax.random.normal(key, (2, 4, 16, 16), dtype=jnp.float32)

    y = jax.block_until_ready(reduce_sum(x))

    y_ref = reduce_sum_reference(x)
    assert y.shape == y_ref.shape, (y.shape, y_ref.shape)
    assert jnp.allclose(y, y_ref, atol=1e-5, rtol=1e-5)

    print("KERNEL_OK")
</pallas_src>

<mosaic_0001>
module attributes {stable_mosaic.version = 11 : i64} {
  func.func @_reduce_sum_kernel(%arg0: i32, %arg1: i32, %arg2: memref<8x2x128xf32, #tpu.memory_space<vmem>>, %arg3: memref<8x16xf32, #tpu.memory_space<vmem>>, %arg4: memref<8x16xf32, #tpu.memory_space<vmem>>) attributes {dimension_semantics = [#tpu.dimension_semantics<parallel>, #tpu.dimension_semantics<arbitrary>], iteration_bounds = array<i64: 1, 1>, scalar_prefetch = 0 : i64, scratch_operands = 1 : i64, tpu.core_type = #tpu.core_type<tc>, window_params = [{transform_indices = @transform_0, window_bounds = array<i64: 8, 2, 128>}, {transform_indices = @transform_1, window_bounds = array<i64: 8, 16>}]} {
    %c0_i32 = arith.constant 0 : i32
    %0 = arith.cmpi eq, %arg1, %c0_i32 : i32
    %1 = arith.extui %0 : i1 to i32
    %c0_i32_0 = arith.constant 0 : i32
    %2 = arith.cmpi ne, %1, %c0_i32_0 : i32
    scf.if %2 {
      %cst_9 = arith.constant 0.000000e+00 : f32
      %26 = vector.broadcast %cst_9 : f32 to vector<8x16xf32>
      %c0_10 = arith.constant 0 : index
      %c0_11 = arith.constant 0 : index
      %27 = vector.load %arg4[%c0_10, %c0_11] : memref<8x16xf32, #tpu.memory_space<vmem>>, vector<8x16xf32>
      tpu.vector_store %arg4[%c0_10, %c0_11], %26 {strides = array<i32>} : memref<8x16xf32, #tpu.memory_space<vmem>>, vector<8x16xf32>,
    } else {
    }
    %c0 = arith.constant 0 : index
    %c0_1 = arith.constant 0 : index
    %c0_2 = arith.constant 0 : index
    %3 = vector.load %arg2[%c0, %c0_1, %c0_2] : memref<8x2x128xf32, #tpu.memory_space<vmem>>, vector<8x2x128xf32>
    %cst = arith.constant dense<0.000000e+00> : vector<8x128xf32>
    %4 = vector.multi_reduction <add>, %3, %cst [1] : vector<8x2x128xf32> to vector<8x128xf32>
    %5 = vector.extract_strided_slice %4 {offsets = [0, 0], sizes = [8, 16], strides = [1, 1]} : vector<8x128xf32> to vector<8x16xf32>
    %6 = vector.extract_strided_slice %4 {offsets = [0, 16], sizes = [8, 16], strides = [1, 1]} : vector<8x128xf32> to vector<8x16xf32>
    %7 = arith.addf %5, %6 : vector<8x16xf32>
    %8 = vector.extract_strided_slice %4 {offsets = [0, 32], sizes = [8, 16], strides = [1, 1]} : vector<8x128xf32> to vector<8x16xf32>
    %9 = arith.addf %7, %8 : vector<8x16xf32>
    %10 = vector.extract_strided_slice %4 {offsets = [0, 48], sizes = [8, 16], strides = [1, 1]} : vector<8x128xf32> to vector<8x16xf32>
    %11 = arith.addf %9, %10 : vector<8x16xf32>
    %12 = vector.extract_strided_slice %4 {offsets = [0, 64], sizes = [8, 16], strides = [1, 1]} : vector<8x128xf32> to vector<8x16xf32>
    %13 = arith.addf %11, %12 : vector<8x16xf32>
    %14 = vector.extract_strided_slice %4 {offsets = [0, 80], sizes = [8, 16], strides = [1, 1]} : vector<8x128xf32> to vector<8x16xf32>
    %15 = arith.addf %13, %14 : vector<8x16xf32>
    %16 = vector.extract_strided_slice %4 {offsets = [0, 96], sizes = [8, 16], strides = [1, 1]} : vector<8x128xf32> to vector<8x16xf32>
    %17 = arith.addf %15, %16 : vector<8x16xf32>
    %18 = vector.extract_strided_slice %4 {offsets = [0, 112], sizes = [8, 16], strides = [1, 1]} : vector<8x128xf32> to vector<8x16xf32>
    %19 = arith.addf %17, %18 : vector<8x16xf32>
    %c0_3 = arith.constant 0 : index
    %c0_4 = arith.constant 0 : index
    %20 = vector.load %arg4[%c0_3, %c0_4] : memref<8x16xf32, #tpu.memory_space<vmem>>, vector<8x16xf32>
    %21 = arith.addf %20, %19 : vector<8x16xf32>
    %c0_5 = arith.constant 0 : index
    %c0_6 = arith.constant 0 : index
    %22 = vector.load %arg4[%c0_5, %c0_6] : memref<8x16xf32, #tpu.memory_space<vmem>>, vector<8x16xf32>
    tpu.vector_store %arg4[%c0_5, %c0_6], %21 {strides = array<i32>} : memref<8x16xf32, #tpu.memory_space<vmem>>, vector<8x16xf32>,
    %c0_i32_7 = arith.constant 0 : i32
    %23 = arith.cmpi eq, %arg1, %c0_i32_7 : i32
    %24 = arith.extui %23 : i1 to i32
    %c0_i32_8 = arith.constant 0 : i32
    %25 = arith.cmpi ne, %24, %c0_i32_8 : i32
    scf.if %25 {
      %c0_9 = arith.constant 0 : index
      %c0_10 = arith.constant 0 : index
      %26 = vector.load %arg4[%c0_9, %c0_10] : memref<8x16xf32, #tpu.memory_space<vmem>>, vector<8x16xf32>
      %c0_11 = arith.constant 0 : index
      %c0_12 = arith.constant 0 : index
      %27 = vector.load %arg3[%c0_11, %c0_12] : memref<8x16xf32, #tpu.memory_space<vmem>>, vector<8x16xf32>
      tpu.vector_store %arg3[%c0_11, %c0_12], %26 {strides = array<i32>} : memref<8x16xf32, #tpu.memory_space<vmem>>, vector<8x16xf32>,
    } else {
    }
    return
  }
  func.func @transform_0(%arg0: i32, %arg1: i32) -> (i32, i32, i32) {
    %c0_i32 = arith.constant 0 : i32
    %c0_i32_0 = arith.constant 0 : i32
    return %arg0, %arg1, %c0_i32 : i32, i32, i32
  }
  func.func @transform_1(%arg0: i32, %arg1: i32) -> (i32, i32) {
    %c0_i32 = arith.constant 0 : i32
    %c0_i32_0 = arith.constant 0 : i32
    return %arg0, %c0_i32 : i32, i32
  }
}

</mosaic_0001>

<llo_original>
// kernel: tpu_custom_call.1
$region0: #{tpu_custom_call.1}
  #allocation0 [shape = 'u32[]', space=smem, size = 0x4, offset = 0x4, fixed_abs, tag = 'smem constant byte address 0x4 - core index']
  #allocation1 [shape = 'u32[144,128]{1,0:T(1,128)}', space=vmem, size = 0x12000, scoped, tag = 'internal scratch']
  #allocation2 [shape = 'f32[8,16]{1,0:T(8,128)}', space=vmem, size = 0x1000, scoped, tag = 'scratch operand']
  %s0 = inlined_call_operand.hbm [shape: f32[8,2,128], index: 0, kind: input, shape index: {}]
  %s1 = inlined_call_operand.hbm [shape: f32[8,16], index: 1, kind: output, shape index: {}]
  %s2 = sld [smem:[#allocation0]]
  $region26: #{tpu_custom_call.1} parent=0
    _
  %s4 = ssub.s32 1, %s2
  %s5 = scalar_select 0, %s4, %s2
  $region1: #{tpu_custom_call.1} parent=0
    #allocation3 [shape = 'u8[8192]{0}', space=vmem, size = 0x2000, scoped, tag = 'input window, operand 0, single buffered']
    #allocation4 [shape = 's32[1]{0}', space=sflag, size = 0x4, scoped, tag = 'scoped memory for tpu_custom_call.1']
    #allocation5 [shape = 's32[1]{0}', space=sflag, size = 0x4, scoped, tag = 'scoped memory for tpu_custom_call.1']
    #allocation6 [shape = 'u8[4096]{0}', space=vmem, size = 0x1000, scoped, tag = 'output window, operand 0, single buffered']
    %6 = vsyncpa [#allocation4], 0
    %7 = vsyncpa [#allocation5], 0
    // Predicated region
    $region2: #{tpu_custom_call.1} parent=1 // pred_check
      _
    $region3: #{tpu_custom_call.1} parent=1 // pred_check_branch
      %9 = sbr.rel (0) target = $region5
    $region4: #{tpu_custom_call.1} parent=1 // pred_region
      %s11 = ssub.s32 256, 256
      %12 = vsyncadd [#allocation4], %s11
      %s13 = sshll.u32 [#allocation3], 4
      %s14 = int_to_ptr.vmem [resolvable:$true] %s13
      %19 = dma.hbm_to_vmem [thread:$0]  %s0, 256, %s14, [#allocation4], 32, 32, 2
    $region5: #{tpu_custom_call.1} parent=1 // pred_fallthru
      _
    // Predicated region
    $region6: #{tpu_custom_call.1} parent=1 // pred_check
      _
    $region7: #{tpu_custom_call.1} parent=1 // pred_check_branch
      %21 = sbr.rel (0) target = $region9
    $region8: #{tpu_custom_call.1} parent=1 // pred_region
      %22 = dma.done [#allocation4], 256
    $region9: #{tpu_custom_call.1} parent=1 // pred_fallthru
      _
    %p23 = scmp.eq.s32.totalorder 0, 0
    // Predicated region
    $region10: #{tpu_custom_call.1} parent=1 // pred_check
      %p24 = pneg %p23
    $region11: #{tpu_custom_call.1} parent=1 // pred_check_branch
      %26 = sbr.rel (%p24) target = $region13
    $region12: #{tpu_custom_call.1} parent=1 // pred_region
      %vm27 = vcmask 130048
      %28 = vst.msk [vmem:[#allocation2] sm:$0xff] %vm27, 0.0
    $region13: #{tpu_custom_call.1} parent=1 // pred_fallthru
      _
    %v29 = vld [vmem:[#allocation3] sm:$0x3]
    %v30 = vld [vmem:[#allocation3 + $0x2] sm:$0x3]
    %v31 = vld [vmem:[#allocation3 + $0x4] sm:$0x3]
    %v32 = vld [vmem:[#allocation3 + $0x6] sm:$0x3]
    %v33 = vld [vmem:[#allocation3 + $0x8] sm:$0x3]
    %v34 = vld [vmem:[#allocation3 + $0xa] sm:$0x3]
    %v35 = vld [vmem:[#allocation3 + $0xc] sm:$0x3]
    %v36 = vld [vmem:[#allocation3 + $0xe] sm:$0x3]
    %vm37 = vcmask 1041408
    %v38 = vsel %vm37, %v29, 0.0
    %v39 = vrot.slane %v38, 4
    %v40 = vadd.f32 %v38, %v39
    %v41 = vrot.slane %v40, 2
    %v42 = vadd.f32 %v40, %v41
    %v43 = vrot.slane %v42, 1
    %v44 = vadd.f32 %v42, %v43
    %v45 = vsel %vm37, %v30, 0.0
    %v46 = vrot.slane %v45, 4
    %v47 = vadd.f32 %v45, %v46
    %v48 = vrot.slane %v47, 2
    %v49 = vadd.f32 %v47, %v48
    %v50 = vrot.slane %v49, 1
    %v51 = vadd.f32 %v49, %v50
    %v52 = vsel %vm37, %v31, 0.0
    %v53 = vrot.slane %v52, 4
    %v54 = vadd.f32 %v52, %v53
    %v55 = vrot.slane %v54, 2
    %v56 = vadd.f32 %v54, %v55
    %v57 = vrot.slane %v56, 1
    %v58 = vadd.f32 %v56, %v57
    %v59 = vsel %vm37, %v32, 0.0
    %v60 = vrot.slane %v59, 4
    %v61 = vadd.f32 %v59, %v60
    %v62 = vrot.slane %v61, 2
    %v63 = vadd.f32 %v61, %v62
    %v64 = vrot.slane %v63, 1
    %v65 = vadd.f32 %v63, %v64
    %v66 = vsel %vm37, %v33, 0.0
    %v67 = vrot.slane %v66, 4
    %v68 = vadd.f32 %v66, %v67
    %v69 = vrot.slane %v68, 2
    %v70 = vadd.f32 %v68, %v69
    %v71 = vrot.slane %v70, 1
    %v72 = vadd.f32 %v70, %v71
    %v73 = vsel %vm37, %v34, 0.0
    %v74 = vrot.slane %v73, 4
    %v75 = vadd.f32 %v73, %v74
    %v76 = vrot.slane %v75, 2
    %v77 = vadd.f32 %v75, %v76
    %v78 = vrot.slane %v77, 1
    %v79 = vadd.f32 %v77, %v78
    %v80 = vsel %vm37, %v35, 0.0
    %v81 = vrot.slane %v80, 4
    %v82 = vadd.f32 %v80, %v81
    %v83 = vrot.slane %v82, 2
    %v84 = vadd.f32 %v82, %v83
    %v85 = vrot.slane %v84, 1
    %v86 = vadd.f32 %v84, %v85
    %v87 = vsel %vm37, %v36, 0.0
    %v88 = vrot.slane %v87, 4
    %v89 = vadd.f32 %v87, %v88
    %v90 = vrot.slane %v89, 2
    %v91 = vadd.f32 %v89, %v90
    %v92 = vrot.slane %v91, 1
    %v93 = vadd.f32 %v91, %v92
    %102 = vrot.lane.b32.xlu0 %v44, 112
    %v103 = vpop.permute.xlu0 %102
    %104 = vrot.lane.b32.xlu0 %v51, 112
    %v105 = vpop.permute.xlu0 %104
    %106 = vrot.lane.b32.xlu0 %v58, 112
    %v107 = vpop.permute.xlu0 %106
    %108 = vrot.lane.b32.xlu0 %v65, 112
    %v109 = vpop.permute.xlu0 %108
    %110 = vrot.lane.b32.xlu0 %v72, 112
    %v111 = vpop.permute.xlu0 %110
    %112 = vrot.lane.b32.xlu0 %v79, 112
    %v113 = vpop.permute.xlu0 %112
    %114 = vrot.lane.b32.xlu0 %v86, 112
    %v115 = vpop.permute.xlu0 %114
    %116 = vrot.lane.b32.xlu0 %v93, 112
    %v117 = vpop.permute.xlu0 %116
    %v126 = vadd.f32 %v44, %v103
    %v127 = vadd.f32 %v51, %v105
    %v128 = vadd.f32 %v58, %v107
    %v129 = vadd.f32 %v65, %v109
    %v130 = vadd.f32 %v72, %v111
    %v131 = vadd.f32 %v79, %v113
    %v132 = vadd.f32 %v86, %v115
    %v133 = vadd.f32 %v93, %v117
    %134 = vrot.lane.b32.xlu0 %v44, 96
    %v135 = vpop.permute.xlu0 %134
    %136 = vrot.lane.b32.xlu0 %v51, 96
    %v137 = vpop.permute.xlu0 %136
    %138 = vrot.lane.b32.xlu0 %v58, 96
    %v139 = vpop.permute.xlu0 %138
    %140 = vrot.lane.b32.xlu0 %v65, 96
    %v141 = vpop.permute.xlu0 %140
    %142 = vrot.lane.b32.xlu0 %v72, 96
    %v143 = vpop.permute.xlu0 %142
    %144 = vrot.lane.b32.xlu0 %v79, 96
    %v145 = vpop.permute.xlu0 %144
    %146 = vrot.lane.b32.xlu0 %v86, 96
    %v147 = vpop.permute.xlu0 %146
    %148 = vrot.lane.b32.xlu0 %v93, 96
    %v149 = vpop.permute.xlu0 %148
    %v158 = vadd.f32 %v126, %v135
    %v159 = vadd.f32 %v127, %v137
    %v160 = vadd.f32 %v128, %v139
    %v161 = vadd.f32 %v129, %v141
    %v162 = vadd.f32 %v130, %v143
    %v163 = vadd.f32 %v131, %v145
    %v164 = vadd.f32 %v132, %v147
    %v165 = vadd.f32 %v133, %v149
    %166 = vrot.lane.b32.xlu0 %v44, 80
    %v167 = vpop.permute.xlu0 %166
    %168 = vrot.lane.b32.xlu0 %v51, 80
    %v169 = vpop.permute.xlu0 %168
    %170 = vrot.lane.b32.xlu0 %v58, 80
    %v171 = vpop.permute.xlu0 %170
    %172 = vrot.lane.b32.xlu0 %v65, 80
    %v173 = vpop.permute.xlu0 %172
    %174 = vrot.lane.b32.xlu0 %v72, 80
    %v175 = vpop.permute.xlu0 %174
    %176 = vrot.lane.b32.xlu0 %v79, 80
    %v177 = vpop.permute.xlu0 %176
    %178 = vrot.lane.b32.xlu0 %v86, 80
    %v179 = vpop.permute.xlu0 %178
    %180 = vrot.lane.b32.xlu0 %v93, 80
    %v181 = vpop.permute.xlu0 %180
    %v190 = vadd.f32 %v158, %v167
    %v191 = vadd.f32 %v159, %v169
    %v192 = vadd.f32 %v160, %v171
    %v193 = vadd.f32 %v161, %v173
    %v194 = vadd.f32 %v162, %v175
    %v195 = vadd.f32 %v163, %v177
    %v196 = vadd.f32 %v164, %v179
    %v197 = vadd.f32 %v165, %v181
    %198 = vrot.lane.b32.xlu0 %v44, 64
    %v199 = vpop.permute.xlu0 %198
    %200 = vrot.lane.b32.xlu0 %v51, 64
    %v201 = vpop.permute.xlu0 %200
    %202 = vrot.lane.b32.xlu0 %v58, 64
    %v203 = vpop.permute.xlu0 %202
    %204 = vrot.lane.b32.xlu0 %v65, 64
    %v205 = vpop.permute.xlu0 %204
    %206 = vrot.lane.b32.xlu0 %v72, 64
    %v207 = vpop.permute.xlu0 %206
    %208 = vrot.lane.b32.xlu0 %v79, 64
    %v209 = vpop.permute.xlu0 %208
    %210 = vrot.lane.b32.xlu0 %v86, 64
    %v211 = vpop.permute.xlu0 %210
    %212 = vrot.lane.b32.xlu0 %v93, 64
    %v213 = vpop.permute.xlu0 %212
    %v222 = vadd.f32 %v190, %v199
    %v223 = vadd.f32 %v191, %v201
    %v224 = vadd.f32 %v192, %v203
    %v225 = vadd.f32 %v193, %v205
    %v226 = vadd.f32 %v194, %v207
    %v227 = vadd.f32 %v195, %v209
    %v228 = vadd.f32 %v196, %v211
    %v229 = vadd.f32 %v197, %v213
    %230 = vrot.lane.b32.xlu0 %v44, 48
    %v231 = vpop.permute.xlu0 %230
    %232 = vrot.lane.b32.xlu0 %v51, 48
    %v233 = vpop.permute.xlu0 %232
    %234 = vrot.lane.b32.xlu0 %v58, 48
    %v235 = vpop.permute.xlu0 %234
    %236 = vrot.lane.b32.xlu0 %v65, 48
    %v237 = vpop.permute.xlu0 %236
    %238 = vrot.lane.b32.xlu0 %v72, 48
    %v239 = vpop.permute.xlu0 %238
    %240 = vrot.lane.b32.xlu0 %v79, 48
    %v241 = vpop.permute.xlu0 %240
    %242 = vrot.lane.b32.xlu0 %v86, 48
    %v243 = vpop.permute.xlu0 %242
    %244 = vrot.lane.b32.xlu0 %v93, 48
    %v245 = vpop.permute.xlu0 %244
    %v254 = vadd.f32 %v222, %v231
    %v255 = vadd.f32 %v223, %v233
    %v256 = vadd.f32 %v224, %v235
    %v257 = vadd.f32 %v225, %v237
    %v258 = vadd.f32 %v226, %v239
    %v259 = vadd.f32 %v227, %v241
    %v260 = vadd.f32 %v228, %v243
    %v261 = vadd.f32 %v229, %v245
    %262 = vrot.lane.b32.xlu0 %v44, 32
    %v263 = vpop.permute.xlu0 %262
    %264 = vrot.lane.b32.xlu0 %v51, 32
    %v265 = vpop.permute.xlu0 %264
    %266 = vrot.lane.b32.xlu0 %v58, 32
    %v267 = vpop.permute.xlu0 %266
    %268 = vrot.lane.b32.xlu0 %v65, 32
    %v269 = vpop.permute.xlu0 %268
    %270 = vrot.lane.b32.xlu0 %v72, 32
    %v271 = vpop.permute.xlu0 %270
    %272 = vrot.lane.b32.xlu0 %v79, 32
    %v273 = vpop.permute.xlu0 %272
    %274 = vrot.lane.b32.xlu0 %v86, 32
    %v275 = vpop.permute.xlu0 %274
    %276 = vrot.lane.b32.xlu0 %v93, 32
    %v277 = vpop.permute.xlu0 %276
    %v286 = vadd.f32 %v254, %v263
    %v287 = vadd.f32 %v255, %v265
    %v288 = vadd.f32 %v256, %v267
    %v289 = vadd.f32 %v257, %v269
    %v290 = vadd.f32 %v258, %v271
    %v291 = vadd.f32 %v259, %v273
    %v292 = vadd.f32 %v260, %v275
    %v293 = vadd.f32 %v261, %v277
    %294 = vrot.lane.b32.xlu0 %v44, 16
    %v295 = vpop.permute.xlu0 %294
    %296 = vrot.lane.b32.xlu0 %v51, 16
    %v297 = vpop.permute.xlu0 %296
    %298 = vrot.lane.b32.xlu0 %v58, 16
    %v299 = vpop.permute.xlu0 %298
    %300 = vrot.lane.b32.xlu0 %v65, 16
    %v301 = vpop.permute.xlu0 %300
    %302 = vrot.lane.b32.xlu0 %v72, 16
    %v303 = vpop.permute.xlu0 %302
    %304 = vrot.lane.b32.xlu0 %v79, 16
    %v305 = vpop.permute.xlu0 %304
    %306 = vrot.lane.b32.xlu0 %v86, 16
    %v307 = vpop.permute.xlu0 %306
    %308 = vrot.lane.b32.xlu0 %v93, 16
    %v309 = vpop.permute.xlu0 %308
    %v318 = vadd.f32 %v286, %v295
    %v319 = vadd.f32 %v287, %v297
    %v320 = vadd.f32 %v288, %v299
    %v321 = vadd.f32 %v289, %v301
    %v322 = vadd.f32 %v290, %v303
    %v323 = vadd.f32 %v291, %v305
    %v324 = vadd.f32 %v292, %v307
    %v325 = vadd.f32 %v293, %v309
    %v326 = vld [vmem:[#allocation2] sm:$0xff]
    %v335 = vrot.slane %v319, 7
    %vm336 = vcmask 1041409
    %v337 = vsel %vm336, %v335, %v318
    %v338 = vrot.slane %v320, 6
    %vm339 = vcmask 1042434
    %v340 = vsel %vm339, %v338, %v337
    %v341 = vrot.slane %v321, 5
    %vm342 = vcmask 1043459
    %v343 = vsel %vm342, %v341, %v340
    %v344 = vrot.slane %v322, 4
    %vm345 = vcmask 1044484
    %v346 = vsel %vm345, %v344, %v343
    %v347 = vrot.slane %v323, 3
    %vm348 = vcmask 1045509
    %v349 = vsel %vm348, %v347, %v346
    %v350 = vrot.slane %v324, 2
    %vm351 = vcmask 1046534
    %v352 = vsel %vm351, %v350, %v349
    %v353 = vrot.slane %v325, 1
    %vm354 = vcmask 1047559
    %v355 = vsel %vm354, %v353, %v352
    %v357 = vadd.f32 %v326, %v355
    %vm358 = vcmask 130048
    %359 = vst.msk [vmem:[#allocation2] sm:$0xff] %vm358, %v357
    // Predicated region
    $region14: #{tpu_custom_call.1} parent=1 // pred_check
      %p360 = pneg %p23
    $region15: #{tpu_custom_call.1} parent=1 // pred_check_branch
      %362 = sbr.rel (%p360) target = $region17
    $region16: #{tpu_custom_call.1} parent=1 // pred_region
      %v363 = vld [vmem:[#allocation2] sm:$0xff]
      %364 = vst.msk [vmem:[#allocation6] sm:$0xff] %vm358, %v363
    $region17: #{tpu_custom_call.1} parent=1 // pred_fallthru
      _
    // Predicated region
    $region18: #{tpu_custom_call.1} parent=1 // pred_check
      _
    $region19: #{tpu_custom_call.1} parent=1 // pred_check_branch
      %366 = sbr.rel (0) target = $region21
    $region20: #{tpu_custom_call.1} parent=1 // pred_region
      %s368 = ssub.s32 128, 128
      %369 = vsyncadd [#allocation5], %s368
      %s371 = sshll.u32 [#allocation6], 4
      %s372 = int_to_ptr.vmem [resolvable:$true] %s371
      %374 = dma.vmem_to_hbm [thread:$0]  %s372, 128, %s1, [#allocation5]
    $region21: #{tpu_custom_call.1} parent=1 // pred_fallthru
      _
    // Predicated region
    $region22: #{tpu_custom_call.1} parent=1 // pred_check
      _
    $region23: #{tpu_custom_call.1} parent=1 // pred_check_branch
      %376 = sbr.rel (0) target = $region25
    $region24: #{tpu_custom_call.1} parent=1 // pred_region
      %377 = dma.done [#allocation5], 128
    $region25: #{tpu_custom_call.1} parent=1 // pred_fallthru
      _
    %378 = vsyncpa [#allocation4], 1
    %379 = vsyncpa [#allocation5], 1

</llo_original>
